<compile_context>
chip_gen: v7x
topology: tpu7x:2x2x1
jax: 0.10.0
libtpu: 0.0.40
codegen_flags: <defaults>
</compile_context>

<pallas_src>
import math

import jax
import jax.numpy as jnp
from jax.experimental import pallas as pl
from jax.experimental.pallas import tpu as pltpu

LOG_STD_MIN = -20.0
LOG_STD_MAX = 2.0
_HALF_LOG_2PI = 0.5 * math.log(2.0 * math.pi)
_LOG2 = math.log(2.0)


def _cdiv(a, b):
    return (a + b - 1) // b


def _round_up(x, m):
    return _cdiv(x, m) * m


def _hw_tile_config():
    """(block_rows, vmem_limit_bytes) tuned per TPU generation.

    v5e/v6e: 128 MiB physical VMEM -> bigger tiles / larger scoped limit.
    v7x: 64 MiB physical VMEM -> conservative tiles / 32 MiB limit.
    """
    try:
        vmem = int(pltpu.get_tpu_info().vmem_capacity_bytes)
    except Exception:  # pragma: no cover - conservative fallback
        vmem = 64 * 1024 * 1024
    if vmem >= 96 * 1024 * 1024:
        return 1024, 64 * 1024 * 1024
    return 512, 32 * 1024 * 1024


def pack_policy_params(params, log_std_multiplier=1.0, log_std_offset=-1.0,
                       compute_dtype=jnp.bfloat16):
    """One-time parameter prep (do on the parameter pytree, NOT per call).

    * Fuses mean / log_std heads: W_head = [Wm | mult*Ws]  (H, 2A),
      b_head = [bm | mult*bs + off]  (1, 2A).
    * Folds log_std_multiplier / log_std_offset into the head (algebraically
      identical: mult*(h@Ws + bs) + off == h@(mult*Ws) + (mult*bs + off)).
    * Casts matrix weights to bf16 for single-pass MXU matmuls; biases stay
      f32 and are added to the f32 accumulator.
    """
    W1, b1, W2, b2, W3, b3, Wm, bm, Ws, bs = params
    mult = jnp.float32(log_std_multiplier)
    off = jnp.float32(log_std_offset)
    Wh = jnp.concatenate([Wm, mult * Ws], axis=1)
    bh = jnp.concatenate([bm, mult * bs + off], axis=1)
    f32 = jnp.float32
    return (W1.astype(compute_dtype), b1.astype(f32),
            W2.astype(compute_dtype), b2.astype(f32),
            W3.astype(compute_dtype), b3.astype(f32),
            Wh.astype(compute_dtype), bh.astype(f32))


def _make_policy_kernel(action_dim, max_action, deterministic, compute_dtype):
    """Build the fused MLP + tanh-Gaussian kernel (max_action is static)."""

    def kernel(obs_ref, w1_ref, b1_ref, w2_ref, b2_ref, w3_ref, b3_ref,
               wh_ref, bh_ref, *rest):
        if deterministic:
            (out_ref,) = rest
        else:
            eps_ref, out_ref = rest

        def dense(x, w_ref, b_ref):
            # bf16 x bf16 -> f32 accumulation: one MXU pass.
            return jnp.dot(x.astype(compute_dtype), w_ref[...],
                           preferred_element_type=jnp.float32) + b_ref[...]

        h = jnp.maximum(dense(obs_ref[...], w1_ref, b1_ref), 0.0)
        h = jnp.maximum(dense(h, w2_ref, b2_ref), 0.0)
        h = jnp.maximum(dense(h, w3_ref, b3_ref), 0.0)
        head = dense(h, wh_ref, bh_ref)                       # (TB, 2A)

        mean = head[:, :action_dim]
        log_std = jnp.clip(head[:, action_dim:], LOG_STD_MIN, LOG_STD_MAX)

        if deterministic:
            # torch: action = tanh(mean); log_prob evaluated at pre = mean
            # (kernel skips torch's atanh(tanh(.)) round-trip, so it stays
            # finite even when tanh saturates in f32).
            pre = mean
            normal_lp = -log_std - _HALF_LOG_2PI              # z == 0
        else:
            eps = eps_ref[...]
            std = jnp.exp(log_std)
            pre = mean + std * eps
            # Normal(mean, std).log_prob(pre) with z = eps (no divide needed).
            normal_lp = -0.5 * (eps * eps) - log_std - _HALF_LOG_2PI

        action = jnp.tanh(pre)
        # TanhTransform.log_abs_det_jacobian(pre, action)
        log_det = 2.0 * (_LOG2 - pre - jax.nn.softplus(-2.0 * pre))
        lp = normal_lp - log_det
        logp = jnp.sum(lp, axis=-1, keepdims=True)            # (TB, 1)

        # Single merged output block: [max_action*action | logp]  -> (TB, A+1)
        out_ref[...] = jnp.concatenate(
            [max_action * action, logp], axis=-1).astype(out_ref.dtype)

    return kernel


def tanh_gaussian_policy_forward(observations, packed_params, eps=None, *,
                                 max_action=1.0, deterministic=False,
                                 block_rows=None, vmem_limit_bytes=None):
    """Fused TanhGaussianPolicy.forward (no_tanh=False).

    observations: (B, S) float32.
    packed_params: output of pack_policy_params(...).
    eps: (B, A) float32 standard-normal noise (required unless deterministic).
    Returns (action (B, A) scaled by max_action, log_prob (B,)).
    """
    W1, b1, W2, b2, W3, b3, Wh, bh = packed_params
    B, S = observations.shape
    two_a = Wh.shape[1]
    A = two_a // 2
    H1, H2, H3 = W1.shape[1], W2.shape[1], W3.shape[1]

    hw_rows, hw_vmem = _hw_tile_config()
    if block_rows is None:
        block_rows = hw_rows
    if vmem_limit_bytes is None:
        vmem_limit_bytes = hw_vmem

    # Balanced batch tiling: >= 2 tiles (v7x megacore can split the batch),
    # TB a multiple of 16 (bf16 sublane packing), padding < 16 rows per tile.
    n_tiles = max(2, _cdiv(B, block_rows))
    TB = _round_up(_cdiv(B, n_tiles), 16)
    B_pad = n_tiles * TB

    if B_pad != B:
        observations = jnp.pad(observations, ((0, B_pad - B), (0, 0)))

    weight_args = (W1, b1, W2, b2, W3, b3, Wh, bh)
    obs_spec = pl.BlockSpec((TB, S), lambda i: (i, 0))
    weight_specs = [pl.BlockSpec(w.shape, lambda i: (0, 0)) for w in weight_args]
    out_spec = pl.BlockSpec((TB, A + 1), lambda i: (i, 0))
    out_shape = jax.ShapeDtypeStruct((B_pad, A + 1), jnp.float32)

    weight_bytes = sum(int(w.size) * w.dtype.itemsize for w in weight_args)
    io_cols = S + (A + 1) + (0 if deterministic else A)
    cost = pl.CostEstimate(
        flops=int(2 * B_pad * (S * H1 + H1 * H2 + H2 * H3 + H3 * two_a)
                  + 30 * B_pad * A),
        transcendentals=int(4 * B_pad * A),
        bytes_accessed=int(4 * B_pad * io_cols + weight_bytes),
    )

    kernel = _make_policy_kernel(A, float(max_action), deterministic,
                                 jnp.bfloat16)

    common = dict(
        out_shape=out_shape,
        grid=(n_tiles,),
        out_specs=out_spec,
        compiler_params=pltpu.CompilerParams(
            dimension_semantics=("parallel",),
            vmem_limit_bytes=vmem_limit_bytes),
        cost_estimate=cost,
    )

    if deterministic:
        # No eps input at all: avoids streaming a dead zeros array from HBM.
        out = pl.pallas_call(
            kernel, in_specs=[obs_spec] + weight_specs, **common,
        )(observations, *weight_args)
    else:
        assert eps is not None and eps.shape == (B, A)
        if B_pad != B:
            eps = jnp.pad(eps, ((0, B_pad - B), (0, 0)))
        eps_spec = pl.BlockSpec((TB, A), lambda i: (i, 0))
        out = pl.pallas_call(
            kernel, in_specs=[obs_spec] + weight_specs + [eps_spec], **common,
        )(observations, *weight_args, eps)

    return out[:B, :A], out[:B, A]


def _reference(obs, params, eps, mult, off, max_action, deterministic, *,
               matmul_dtype=None):
    """Pure-JAX reference matching the torch module semantics.

    matmul_dtype=None   -> true f32 matmuls (Precision.HIGHEST).
    matmul_dtype=bf16   -> precision-matched reference for the kernel.
    """
    W1, b1, W2, b2, W3, b3, Wm, bm, Ws, bs = params
    if matmul_dtype is None:
        prec = jax.lax.Precision.HIGHEST
        cast = lambda x: x
    else:
        prec = None
        cast = lambda x: x.astype(matmul_dtype)

    def dense(x, w, b):
        return jnp.dot(cast(x), cast(w), precision=prec,
                       preferred_element_type=jnp.float32) + b

    h = jax.nn.relu(dense(obs, W1, b1))
    h = jax.nn.relu(dense(h, W2, b2))
    h = jax.nn.relu(dense(h, W3, b3))
    mean = dense(h, Wm, bm)
    log_std = mult * dense(h, Ws, bs) + off
    log_std = jnp.clip(log_std, LOG_STD_MIN, LOG_STD_MAX)
    std = jnp.exp(log_std)
    pre = mean if deterministic else mean + std * eps
    action = jnp.tanh(pre)
    z = (pre - mean) / std
    normal_lp = -0.5 * z * z - log_std - _HALF_LOG_2PI
    log_det = 2.0 * (_LOG2 - pre - jax.nn.softplus(-2.0 * pre))
    logp = jnp.sum(normal_lp - log_det, axis=-1)
    return max_action * action, logp


if __name__ == "__main__":
    key = jax.random.PRNGKey(0)
    ks = jax.random.split(key, 12)

    # Small shapes consistent with the module (halfcheetah-like dims, H=256).
    B, S, A, H = 10, 17, 6, 256
    max_action = 2.0
    log_std_multiplier, log_std_offset = 1.0, -1.0

    obs = jax.random.normal(ks[0], (B, S), dtype=jnp.float32)
    eps = jax.random.normal(ks[1], (B, A), dtype=jnp.float32)

    def dense_init(k, fin, fout, scale):
        return jax.random.normal(k, (fin, fout), dtype=jnp.float32) * scale

    W1 = dense_init(ks[2], S, H, 0.2)
    b1 = jax.random.normal(ks[3], (1, H), dtype=jnp.float32) * 0.05
    W2 = dense_init(ks[4], H, H, 0.08)
    b2 = jax.random.normal(ks[5], (1, H), dtype=jnp.float32) * 0.05
    W3 = dense_init(ks[6], H, H, 0.08)
    b3 = jax.random.normal(ks[7], (1, H), dtype=jnp.float32) * 0.05
    Wm = dense_init(ks[8], H, A, 0.05)
    bm = jnp.zeros((1, A), dtype=jnp.float32)
    Ws = dense_init(ks[9], H, A, 0.05)
    bs = jnp.zeros((1, A), dtype=jnp.float32)
    params = (W1, b1, W2, b2, W3, b3, Wm, bm, Ws, bs)

    packed = pack_policy_params(params, log_std_multiplier, log_std_offset)

    # Stochastic path.
    action, logp = tanh_gaussian_policy_forward(
        obs, packed, eps, max_action=max_action, deterministic=False)
    jax.block_until_ready((action, logp))
    assert action.shape == (B, A) and logp.shape == (B,)

    # Precision-matched (bf16-matmul) reference: tight-ish tolerances.
    ref_a, ref_lp = _reference(obs, params, eps, log_std_multiplier,
                               log_std_offset, max_action, False,
                               matmul_dtype=jnp.bfloat16)
    assert jnp.allclose(action, ref_a, atol=5e-3, rtol=5e-3)
    assert jnp.allclose(logp, ref_lp, atol=5e-2, rtol=5e-2)

    # Full-f32 reference: loose sanity bound (bf16 matmul quantization).
    f32_a, f32_lp = _reference(obs, params, eps, log_std_multiplier,
                               log_std_offset, max_action, False)
    assert jnp.allclose(action, f32_a, atol=5e-2, rtol=5e-2)
    assert jnp.allclose(logp, f32_lp, atol=3e-1, rtol=1e-1)

    # Deterministic path (no eps streamed at all).
    det_action, det_logp = tanh_gaussian_policy_forward(
        obs, packed, max_action=max_action, deterministic=True)
    jax.block_until_ready((det_action, det_logp))

    ref_da, ref_dlp = _reference(obs, params, None, log_std_multiplier,
                                 log_std_offset, max_action, True,
                                 matmul_dtype=jnp.bfloat16)
    assert jnp.allclose(det_action, ref_da, atol=5e-3, rtol=5e-3)
    assert jnp.allclose(det_logp, ref_dlp, atol=5e-2, rtol=5e-2)

    print("KERNEL_OK")
</pallas_src>

<mosaic_0001>
module attributes {stable_mosaic.version = 11 : i64} {
  func.func @kernel(%arg0: i32, %arg1: memref<16x17xf32, #tpu.memory_space<vmem>>, %arg2: memref<17x256xbf16, #tpu.memory_space<vmem>>, %arg3: memref<1x256xf32, #tpu.memory_space<vmem>>, %arg4: memref<256x256xbf16, #tpu.memory_space<vmem>>, %arg5: memref<1x256xf32, #tpu.memory_space<vmem>>, %arg6: memref<256x256xbf16, #tpu.memory_space<vmem>>, %arg7: memref<1x256xf32, #tpu.memory_space<vmem>>, %arg8: memref<256x12xbf16, #tpu.memory_space<vmem>>, %arg9: memref<1x12xf32, #tpu.memory_space<vmem>>, %arg10: memref<16x6xf32, #tpu.memory_space<vmem>>, %arg11: memref<16x7xf32, #tpu.memory_space<vmem>>) attributes {dimension_semantics = [#tpu.dimension_semantics<parallel>], iteration_bounds = array<i64: 2>, scalar_prefetch = 0 : i64, scratch_operands = 0 : i64, tpu.core_type = #tpu.core_type<tc>, window_params = [{transform_indices = @transform_0, window_bounds = array<i64: 16, 17>}, {pipeline_mode = #tpu.pipeline_mode<synchronous>, transform_indices = @transform_1, window_bounds = array<i64: 17, 256>}, {pipeline_mode = #tpu.pipeline_mode<synchronous>, transform_indices = @transform_2, window_bounds = array<i64: 1, 256>}, {pipeline_mode = #tpu.pipeline_mode<synchronous>, transform_indices = @transform_3, window_bounds = array<i64: 256, 256>}, {pipeline_mode = #tpu.pipeline_mode<synchronous>, transform_indices = @transform_4, window_bounds = array<i64: 1, 256>}, {pipeline_mode = #tpu.pipeline_mode<synchronous>, transform_indices = @transform_5, window_bounds = array<i64: 256, 256>}, {pipeline_mode = #tpu.pipeline_mode<synchronous>, transform_indices = @transform_6, window_bounds = array<i64: 1, 256>}, {pipeline_mode = #tpu.pipeline_mode<synchronous>, transform_indices = @transform_7, window_bounds = array<i64: 256, 12>}, {pipeline_mode = #tpu.pipeline_mode<synchronous>, transform_indices = @transform_8, window_bounds = array<i64: 1, 12>}, {transform_indices = @transform_9, window_bounds = array<i64: 16, 6>}, {transform_indices = @transform_10, window_bounds = array<i64: 16, 7>}]} {
    %c0 = arith.constant 0 : index
    %c0_0 = arith.constant 0 : index
    %0 = vector.load %arg1[%c0, %c0_0] : memref<16x17xf32, #tpu.memory_space<vmem>>, vector<16x17xf32>
    %1 = arith.truncf %0 : vector<16x17xf32> to vector<16x17xbf16>
    %c0_1 = arith.constant 0 : index
    %c0_2 = arith.constant 0 : index
    %2 = vector.load %arg2[%c0_1, %c0_2] : memref<17x256xbf16, #tpu.memory_space<vmem>>, vector<17x256xbf16>
    %cst = arith.constant dense<0.000000e+00> : vector<16x256xf32>
    %3 = tpu.matmul %1, %2, %cst {dimension_numbers = #tpu.dot_dimension_numbers<[1], [0], [0], [1], [0, 0, 1, 1], [], []>} : vector<16x17xbf16>, vector<17x256xbf16>, vector<16x256xf32> -> vector<16x256xf32>
    %c0_3 = arith.constant 0 : index
    %c0_4 = arith.constant 0 : index
    %4 = vector.load %arg3[%c0_3, %c0_4] : memref<1x256xf32, #tpu.memory_space<vmem>>, vector<1x256xf32>
    %5 = vector.broadcast %4 : vector<1x256xf32> to vector<16x256xf32>
    %6 = arith.addf %3, %5 : vector<16x256xf32>
    %cst_5 = arith.constant 0.000000e+00 : f32
    %7 = vector.broadcast %cst_5 : f32 to vector<16x256xf32>
    %8 = arith.maximumf %6, %7 : vector<16x256xf32>
    %9 = arith.truncf %8 : vector<16x256xf32> to vector<16x256xbf16>
    %c0_6 = arith.constant 0 : index
    %c0_7 = arith.constant 0 : index
    %10 = vector.load %arg4[%c0_6, %c0_7] : memref<256x256xbf16, #tpu.memory_space<vmem>>, vector<256x256xbf16>
    %cst_8 = arith.constant dense<0.000000e+00> : vector<16x256xf32>
    %11 = tpu.matmul %9, %10, %cst_8 {dimension_numbers = #tpu.dot_dimension_numbers<[1], [0], [0], [1], [0, 0, 1, 1], [], []>} : vector<16x256xbf16>, vector<256x256xbf16>, vector<16x256xf32> -> vector<16x256xf32>
    %c0_9 = arith.constant 0 : index
    %c0_10 = arith.constant 0 : index
    %12 = vector.load %arg5[%c0_9, %c0_10] : memref<1x256xf32, #tpu.memory_space<vmem>>, vector<1x256xf32>
    %13 = vector.broadcast %12 : vector<1x256xf32> to vector<16x256xf32>
    %14 = arith.addf %11, %13 : vector<16x256xf32>
    %cst_11 = arith.constant 0.000000e+00 : f32
    %15 = vector.broadcast %cst_11 : f32 to vector<16x256xf32>
    %16 = arith.maximumf %14, %15 : vector<16x256xf32>
    %17 = arith.truncf %16 : vector<16x256xf32> to vector<16x256xbf16>
    %c0_12 = arith.constant 0 : index
    %c0_13 = arith.constant 0 : index
    %18 = vector.load %arg6[%c0_12, %c0_13] : memref<256x256xbf16, #tpu.memory_space<vmem>>, vector<256x256xbf16>
    %cst_14 = arith.constant dense<0.000000e+00> : vector<16x256xf32>
    %19 = tpu.matmul %17, %18, %cst_14 {dimension_numbers = #tpu.dot_dimension_numbers<[1], [0], [0], [1], [0, 0, 1, 1], [], []>} : vector<16x256xbf16>, vector<256x256xbf16>, vector<16x256xf32> -> vector<16x256xf32>
    %c0_15 = arith.constant 0 : index
    %c0_16 = arith.constant 0 : index
    %20 = vector.load %arg7[%c0_15, %c0_16] : memref<1x256xf32, #tpu.memory_space<vmem>>, vector<1x256xf32>
    %21 = vector.broadcast %20 : vector<1x256xf32> to vector<16x256xf32>
    %22 = arith.addf %19, %21 : vector<16x256xf32>
    %cst_17 = arith.constant 0.000000e+00 : f32
    %23 = vector.broadcast %cst_17 : f32 to vector<16x256xf32>
    %24 = arith.maximumf %22, %23 : vector<16x256xf32>
    %25 = arith.truncf %24 : vector<16x256xf32> to vector<16x256xbf16>
    %c0_18 = arith.constant 0 : index
    %c0_19 = arith.constant 0 : index
    %26 = vector.load %arg8[%c0_18, %c0_19] : memref<256x12xbf16, #tpu.memory_space<vmem>>, vector<256x12xbf16>
    %cst_20 = arith.constant dense<0.000000e+00> : vector<16x12xf32>
    %27 = tpu.matmul %25, %26, %cst_20 {dimension_numbers = #tpu.dot_dimension_numbers<[1], [0], [0], [1], [0, 0, 1, 1], [], []>} : vector<16x256xbf16>, vector<256x12xbf16>, vector<16x12xf32> -> vector<16x12xf32>
    %c0_21 = arith.constant 0 : index
    %c0_22 = arith.constant 0 : index
    %28 = vector.load %arg9[%c0_21, %c0_22] : memref<1x12xf32, #tpu.memory_space<vmem>>, vector<1x12xf32>
    %29 = vector.broadcast %28 : vector<1x12xf32> to vector<16x12xf32>
    %30 = arith.addf %27, %29 : vector<16x12xf32>
    %31 = vector.extract_strided_slice %30 {offsets = [0, 0], sizes = [16, 6], strides = [1, 1]} : vector<16x12xf32> to vector<16x6xf32>
    %32 = vector.extract_strided_slice %30 {offsets = [0, 6], sizes = [16, 6], strides = [1, 1]} : vector<16x12xf32> to vector<16x6xf32>
    %cst_23 = arith.constant -2.000000e+01 : f32
    %cst_24 = arith.constant 2.000000e+00 : f32
    %33 = vector.broadcast %cst_23 : f32 to vector<16x6xf32>
    %34 = arith.maximumf %33, %32 : vector<16x6xf32>
    %35 = vector.broadcast %cst_24 : f32 to vector<16x6xf32>
    %36 = arith.minimumf %35, %34 : vector<16x6xf32>
    %c0_25 = arith.constant 0 : index
    %c0_26 = arith.constant 0 : index
    %37 = vector.load %arg10[%c0_25, %c0_26] : memref<16x6xf32, #tpu.memory_space<vmem>>, vector<16x6xf32>
    %38 = math.exp %36 : vector<16x6xf32>
    %39 = arith.mulf %38, %37 : vector<16x6xf32>
    %40 = arith.addf %31, %39 : vector<16x6xf32>
    %41 = arith.mulf %37, %37 : vector<16x6xf32>
    %cst_27 = arith.constant -5.000000e-01 : f32
    %42 = vector.broadcast %cst_27 : f32 to vector<16x6xf32>
    %43 = arith.mulf %42, %41 : vector<16x6xf32>
    %44 = arith.subf %43, %36 : vector<16x6xf32>
    %cst_28 = arith.constant 0.918938517 : f32
    %45 = vector.broadcast %cst_28 : f32 to vector<16x6xf32>
    %46 = arith.subf %44, %45 : vector<16x6xf32>
    %47 = math.tanh %40 : vector<16x6xf32>
    %cst_29 = arith.constant 0.693147182 : f32
    %48 = vector.broadcast %cst_29 : f32 to vector<16x6xf32>
    %49 = arith.subf %48, %40 : vector<16x6xf32>
    %cst_30 = arith.constant -2.000000e+00 : f32
    %50 = vector.broadcast %cst_30 : f32 to vector<16x6xf32>
    %51 = arith.mulf %50, %40 : vector<16x6xf32>
    %cst_31 = arith.constant 0.000000e+00 : f32
    %52 = vector.broadcast %cst_31 : f32 to vector<16x6xf32>
    %53 = arith.maximumf %51, %52 : vector<16x6xf32>
    %54 = vector.broadcast %cst_31 : f32 to vector<16x6xf32>
    %55 = arith.subf %51, %54 : vector<16x6xf32>
    %56 = arith.cmpf one, %55, %55 : vector<16x6xf32>
    %57 = vector.broadcast %cst_31 : f32 to vector<16x6xf32>
    %58 = arith.addf %51, %57 : vector<16x6xf32>
    %59 = math.absf %55 : vector<16x6xf32>
    %cst_32 = arith.constant 0.000000e+00 : f32
    %60 = vector.broadcast %cst_32 : f32 to vector<16x6xf32>
    %61 = arith.subf %60, %59 : vector<16x6xf32>
    %62 = math.exp %61 : vector<16x6xf32>
    %63 = math.log1p %62 : vector<16x6xf32>
    %64 = arith.addf %53, %63 : vector<16x6xf32>
    %65 = arith.select %56, %58, %64 : vector<16x6xi1>, vector<16x6xf32>
    %66 = arith.subf %49, %65 : vector<16x6xf32>
    %cst_33 = arith.constant 2.000000e+00 : f32
    %67 = vector.broadcast %cst_33 : f32 to vector<16x6xf32>
    %68 = arith.mulf %67, %66 : vector<16x6xf32>
    %69 = arith.subf %46, %68 : vector<16x6xf32>
    %cst_34 = arith.constant dense<0.000000e+00> : vector<16xf32>
    %70 = vector.multi_reduction <add>, %69, %cst_34 [1] : vector<16x6xf32> to vector<16xf32>
    %71 = vector.shape_cast %70 : vector<16xf32> to vector<16x1xf32>
    %cst_35 = arith.constant 2.000000e+00 : f32
    %72 = vector.broadcast %cst_35 : f32 to vector<16x6xf32>
    %73 = arith.mulf %72, %47 : vector<16x6xf32>
    %74 = tpu.concatenate %73, %71 in 1 : vector<16x6xf32>, vector<16x1xf32> -> vector<16x7xf32>
    %c0_36 = arith.constant 0 : index
    %c0_37 = arith.constant 0 : index
    %75 = vector.load %arg11[%c0_36, %c0_37] : memref<16x7xf32, #tpu.memory_space<vmem>>, vector<16x7xf32>
    tpu.vector_store %arg11[%c0_36, %c0_37], %74 {strides = array<i32>} : memref<16x7xf32, #tpu.memory_space<vmem>>, vector<16x7xf32>,
    return
  }
  func.func @transform_0(%arg0: i32) -> (i32, i32) {
    %c0_i32 = arith.constant 0 : i32
    %c0_i32_0 = arith.constant 0 : i32
    return %arg0, %c0_i32 : i32, i32
  }
  func.func @transform_1(%arg0: i32) -> (i32, i32) {
    %c0_i32 = arith.constant 0 : i32
    %c0_i32_0 = arith.constant 0 : i32
    %c0_i32_1 = arith.constant 0 : i32
    return %c0_i32, %c0_i32_0 : i32, i32
  }
  func.func @transform_2(%arg0: i32) -> (i32, i32) {
    %c0_i32 = arith.constant 0 : i32
    %c0_i32_0 = arith.constant 0 : i32
    %c0_i32_1 = arith.constant 0 : i32
    return %c0_i32, %c0_i32_0 : i32, i32
  }
  func.func @transform_3(%arg0: i32) -> (i32, i32) {
    %c0_i32 = arith.constant 0 : i32
    %c0_i32_0 = arith.constant 0 : i32
    %c0_i32_1 = arith.constant 0 : i32
    return %c0_i32, %c0_i32_0 : i32, i32
  }
  func.func @transform_4(%arg0: i32) -> (i32, i32) {
    %c0_i32 = arith.constant 0 : i32
    %c0_i32_0 = arith.constant 0 : i32
    %c0_i32_1 = arith.constant 0 : i32
    return %c0_i32, %c0_i32_0 : i32, i32
  }
  func.func @transform_5(%arg0: i32) -> (i32, i32) {
    %c0_i32 = arith.constant 0 : i32
    %c0_i32_0 = arith.constant 0 : i32
    %c0_i32_1 = arith.constant 0 : i32
    return %c0_i32, %c0_i32_0 : i32, i32
  }
  func.func @transform_6(%arg0: i32) -> (i32, i32) {
    %c0_i32 = arith.constant 0 : i32
    %c0_i32_0 = arith.constant 0 : i32
    %c0_i32_1 = arith.constant 0 : i32
    return %c0_i32, %c0_i32_0 : i32, i32
  }
  func.func @transform_7(%arg0: i32) -> (i32, i32) {
    %c0_i32 = arith.constant 0 : i32
    %c0_i32_0 = arith.constant 0 : i32
    %c0_i32_1 = arith.constant 0 : i32
    return %c0_i32, %c0_i32_0 : i32, i32
  }
  func.func @transform_8(%arg0: i32) -> (i32, i32) {
    %c0_i32 = arith.constant 0 : i32
    %c0_i32_0 = arith.constant 0 : i32
    %c0_i32_1 = arith.constant 0 : i32
    return %c0_i32, %c0_i32_0 : i32, i32
  }
  func.func @transform_9(%arg0: i32) -> (i32, i32) {
    %c0_i32 = arith.constant 0 : i32
    %c0_i32_0 = arith.constant 0 : i32
    return %arg0, %c0_i32 : i32, i32
  }
  func.func @transform_10(%arg0: i32) -> (i32, i32) {
    %c0_i32 = arith.constant 0 : i32
    %c0_i32_0 = arith.constant 0 : i32
    return %arg0, %c0_i32 : i32, i32
  }
}

</mosaic_0001>

<llo_original>
// kernel: tpu_custom_call.1
$region0: #{tpu_custom_call.1}
  #allocation0 [shape = 'u32[]', space=smem, size = 0x4, offset = 0x4, fixed_abs, tag = 'smem constant byte address 0x4 - core index']
  #allocation1 [shape = 'u32[144,128]{1,0:T(1,128)}', space=vmem, size = 0x12000, scoped, tag = 'internal scratch']
  %s0 = inlined_call_operand.vmem [shape: f32[32,17], index: 0, kind: input, shape index: {}]
  %s1 = inlined_call_operand.hbm [shape: bf16[17,256], index: 1, kind: input, shape index: {}]
  %s2 = inlined_call_operand.vmem [shape: f32[1,256], index: 2, kind: input, shape index: {}]
  %s3 = inlined_call_operand.hbm [shape: bf16[256,256], index: 3, kind: input, shape index: {}]
  %s4 = inlined_call_operand.hbm [shape: f32[1,256], index: 4, kind: input, shape index: {}]
  %s5 = inlined_call_operand.vmem [shape: bf16[256,256], index: 5, kind: input, shape index: {}]
  %s6 = inlined_call_operand.hbm [shape: f32[1,256], index: 6, kind: input, shape index: {}]
  %s7 = inlined_call_operand.vmem [shape: bf16[256,12], index: 7, kind: input, shape index: {}]
  %s8 = inlined_call_operand.vmem [shape: f32[1,12], index: 8, kind: input, shape index: {}]
  %s9 = inlined_call_operand.vmem [shape: f32[32,6], index: 9, kind: input, shape index: {}]
  %s10 = inlined_call_operand.vmem [shape: f32[32,7], index: 10, kind: output, shape index: {}]
  %s11 = sld [smem:[#allocation0]]
  $region89: #{tpu_custom_call.1} parent=0
    _
  %s13 = ssub.s32 1, %s11
  %s14 = scalar_select 0, %s13, %s11
  $region1: #{tpu_custom_call.1} parent=0
    #allocation2 [shape = 'u8[12288]{0}', space=vmem, size = 0x3000, scoped, tag = 'input window, operand 1, single buffered']
    #allocation3 [shape = 's32[2]{0}', space=sflag, size = 0x8, scoped, tag = 'scoped memory for tpu_custom_call.1']
    #allocation4 [shape = 'u8[131072]{0}', space=vmem, size = 0x20000, scoped, tag = 'input window, operand 3, single buffered']
    #allocation5 [shape = 's32[1]{0}', space=sflag, size = 0x4, scoped, tag = 'scoped memory for tpu_custom_call.1']
    #allocation6 [shape = 'u8[1024]{0}', space=vmem, size = 0x400, scoped, tag = 'input window, operand 4, single buffered']
    #allocation7 [shape = 'u8[1024]{0}', space=vmem, size = 0x400, scoped, tag = 'input window, operand 6, single buffered']
    #allocation8 [shape = 's32[1]{0}', space=sflag, size = 0x4, scoped, tag = 'scoped memory for tpu_custom_call.1']
    %15 = vsyncpa [#allocation3], 0
    %16 = vsyncpa [#allocation5], 0
    %17 = vsyncpa [#allocation8], 0
    loop: start=0, step=1, limit=4
    $region2: #{tpu_custom_call.1} parent=1 // loop_pre_header
      _
    $region3: #{tpu_custom_call.1} parent=1 // loop_header
      %s19 = sphi 0, %s23
      %p20 = scmp.ge.s32.totalorder %s19, 4
      %s29 = sphi 0, %s31
      %s32 = sphi 0, %s29
      %s33 = sphi 0, %s32
      %s49 = sphi 0, %s33
      %s53 = sphi 0, %s53
      %s55 = sphi 0, %s53
      %s56 = sphi 0, %s55
      %s70 = sphi 0, %s56
      %s74 = sphi 0, %s74
      %s76 = sphi 0, %s74
      %s77 = sphi 0, %s76
      %s91 = sphi 0, %s77
      %s95 = sphi 0, %s95
      %s97 = sphi 0, %s95
      %s98 = sphi 0, %s97
      %s112 = sphi 0, %s98
      %s116 = sphi 0, %s116
      %s118 = sphi 0, %s116
      %s119 = sphi 0, %s118
      %s133 = sphi 0, %s119
      %s137 = sphi 0, %s137
      %s139 = sphi 0, %s137
      %s140 = sphi 0, %s139
      %s154 = sphi 0, %s140
      %s158 = sphi 0, %s158
      %s160 = sphi 0, %s158
      %s161 = sphi 0, %s160
      %s175 = sphi 0, %s161
      %s179 = sphi 0, %s179
      %s181 = sphi 0, %s179
      %s182 = sphi 0, %s181
      %s196 = sphi 0, %s182
      %s200 = sphi 0, %s200
      %s202 = sphi 0, %s200
      %s203 = sphi 0, %s202
      %s217 = sphi 0, %s203
      %s223 = sphi 0, %s225
      %s226 = sphi 0, %s223
      %s227 = sphi 0, %s226
      %s243 = sphi 0, %s227
      %s249 = sphi 0, %s251
      %s252 = sphi 0, %s249
      %s253 = sphi 0, %s252
      %s269 = sphi 0, %s253
    $region4: #{tpu_custom_call.1} parent=1 // loop_header_branch
      %22 = sbr.rel (%p20) target = $region8
    $region5: #{tpu_custom_call.1} parent=1 // loop_body
      %s24 = ssub.s32 %s19, 1
      %s25 = ssub.s32 %s19, 2
      %s26 = sadd.s32 %s19, 1
      %s27 = ssub.s32 %s19, %s26
      %p28 = scmp.eq.s32.totalorder %s27, 0
      %s30 = sadd.s32 %s29, 1
      %s31 = scalar_select %p28, %s29, %s30
      %p34 = pneg %p28
      %p35 = scmp.eq.s32.totalorder %s19, 1
      %p36 = por %p34, %p35
      %p37 = scmp.ne.s32.totalorder %s29, %s32
      %p38 = scmp.eq.s32.totalorder %s19, 0
      %p39 = por %p37, %p38
      %p40 = scmp.ne.s32.totalorder %s29, %s32
      %p41 = scmp.eq.s32.totalorder %s24, 1
      %p42 = por %p40, %p41
      %p43 = scmp.ne.s32.totalorder %s32, %s33
      %p44 = scmp.eq.s32.totalorder %s24, 0
      %p45 = por %p43, %p44
      %p46 = scmp.ne.s32.totalorder %s32, %s33
      %p47 = scmp.eq.s32.totalorder %s25, 1
      %p48 = por %p46, %p47
      %p50 = scmp.ne.s32.totalorder %s33, %s49
      %p51 = scmp.eq.s32.totalorder %s25, 0
      %p52 = por %p50, %p51
      %s54 = sadd.s32 %s53, 1
      %p57 = scmp.eq.s32.totalorder %s19, 1
      %p58 = scmp.ne.s32.totalorder %s53, %s55
      %p59 = scmp.eq.s32.totalorder %s19, 0
      %p60 = por %p58, %p59
      %p61 = scmp.ne.s32.totalorder %s53, %s55
      %p62 = scmp.eq.s32.totalorder %s24, 1
      %p63 = por %p61, %p62
      %p64 = scmp.ne.s32.totalorder %s55, %s56
      %p65 = scmp.eq.s32.totalorder %s24, 0
      %p66 = por %p64, %p65
      %p67 = scmp.ne.s32.totalorder %s55, %s56
      %p68 = scmp.eq.s32.totalorder %s25, 1
      %p69 = por %p67, %p68
      %p71 = scmp.ne.s32.totalorder %s56, %s70
      %p72 = scmp.eq.s32.totalorder %s25, 0
      %p73 = por %p71, %p72
      %s75 = sadd.s32 %s74, 1
      %p78 = scmp.eq.s32.totalorder %s19, 1
      %p79 = scmp.ne.s32.totalorder %s74, %s76
      %p80 = scmp.eq.s32.totalorder %s19, 0
      %p81 = por %p79, %p80
      %p82 = scmp.ne.s32.totalorder %s74, %s76
      %p83 = scmp.eq.s32.totalorder %s24, 1
      %p84 = por %p82, %p83
      %p85 = scmp.ne.s32.totalorder %s76, %s77
      %p86 = scmp.eq.s32.totalorder %s24, 0
      %p87 = por %p85, %p86
      %p88 = scmp.ne.s32.totalorder %s76, %s77
      %p89 = scmp.eq.s32.totalorder %s25, 1
      %p90 = por %p88, %p89
      %p92 = scmp.ne.s32.totalorder %s77, %s91
      %p93 = scmp.eq.s32.totalorder %s25, 0
      %p94 = por %p92, %p93
      %s96 = sadd.s32 %s95, 1
      %p99 = scmp.eq.s32.totalorder %s19, 1
      %p100 = scmp.ne.s32.totalorder %s95, %s97
      %p101 = scmp.eq.s32.totalorder %s19, 0
      %p102 = por %p100, %p101
      %p103 = scmp.ne.s32.totalorder %s95, %s97
      %p104 = scmp.eq.s32.totalorder %s24, 1
      %p105 = por %p103, %p104
      %p106 = scmp.ne.s32.totalorder %s97, %s98
      %p107 = scmp.eq.s32.totalorder %s24, 0
      %p108 = por %p106, %p107
      %p109 = scmp.ne.s32.totalorder %s97, %s98
      %p110 = scmp.eq.s32.totalorder %s25, 1
      %p111 = por %p109, %p110
      %p113 = scmp.ne.s32.totalorder %s98, %s112
      %p114 = scmp.eq.s32.totalorder %s25, 0
      %p115 = por %p113, %p114
      %s117 = sadd.s32 %s116, 1
      %p120 = scmp.eq.s32.totalorder %s19, 1
      %p121 = scmp.ne.s32.totalorder %s116, %s118
      %p122 = scmp.eq.s32.totalorder %s19, 0
      %p123 = por %p121, %p122
      %p124 = scmp.ne.s32.totalorder %s116, %s118
      %p125 = scmp.eq.s32.totalorder %s24, 1
      %p126 = por %p124, %p125
      %p127 = scmp.ne.s32.totalorder %s118, %s119
      %p128 = scmp.eq.s32.totalorder %s24, 0
      %p129 = por %p127, %p128
      %p130 = scmp.ne.s32.totalorder %s118, %s119
      %p131 = scmp.eq.s32.totalorder %s25, 1
      %p132 = por %p130, %p131
      %p134 = scmp.ne.s32.totalorder %s119, %s133
      %p135 = scmp.eq.s32.totalorder %s25, 0
      %p136 = por %p134, %p135
      %s138 = sadd.s32 %s137, 1
      %p141 = scmp.eq.s32.totalorder %s19, 1
      %p142 = scmp.ne.s32.totalorder %s137, %s139
      %p143 = scmp.eq.s32.totalorder %s19, 0
      %p144 = por %p142, %p143
      %p145 = scmp.ne.s32.totalorder %s137, %s139
      %p146 = scmp.eq.s32.totalorder %s24, 1
      %p147 = por %p145, %p146
      %p148 = scmp.ne.s32.totalorder %s139, %s140
      %p149 = scmp.eq.s32.totalorder %s24, 0
      %p150 = por %p148, %p149
      %p151 = scmp.ne.s32.totalorder %s139, %s140
      %p152 = scmp.eq.s32.totalorder %s25, 1
      %p153 = por %p151, %p152
      %p155 = scmp.ne.s32.totalorder %s140, %s154
      %p156 = scmp.eq.s32.totalorder %s25, 0
      %p157 = por %p155, %p156
      %s159 = sadd.s32 %s158, 1
      %p162 = scmp.eq.s32.totalorder %s19, 1
      %p163 = scmp.ne.s32.totalorder %s158, %s160
      %p164 = scmp.eq.s32.totalorder %s19, 0
      %p165 = por %p163, %p164
      %p166 = scmp.ne.s32.totalorder %s158, %s160
      %p167 = scmp.eq.s32.totalorder %s24, 1
      %p168 = por %p166, %p167
      %p169 = scmp.ne.s32.totalorder %s160, %s161
      %p170 = scmp.eq.s32.totalorder %s24, 0
      %p171 = por %p169, %p170
      %p172 = scmp.ne.s32.totalorder %s160, %s161
      %p173 = scmp.eq.s32.totalorder %s25, 1
      %p174 = por %p172, %p173
      %p176 = scmp.ne.s32.totalorder %s161, %s175
      %p177 = scmp.eq.s32.totalorder %s25, 0
      %p178 = por %p176, %p177
      %s180 = sadd.s32 %s179, 1
      %p183 = scmp.eq.s32.totalorder %s19, 1
      %p184 = scmp.ne.s32.totalorder %s179, %s181
      %p185 = scmp.eq.s32.totalorder %s19, 0
      %p186 = por %p184, %p185
      %p187 = scmp.ne.s32.totalorder %s179, %s181
      %p188 = scmp.eq.s32.totalorder %s24, 1
      %p189 = por %p187, %p188
      %p190 = scmp.ne.s32.totalorder %s181, %s182
      %p191 = scmp.eq.s32.totalorder %s24, 0
      %p192 = por %p190, %p191
      %p193 = scmp.ne.s32.totalorder %s181, %s182
      %p194 = scmp.eq.s32.totalorder %s25, 1
      %p195 = por %p193, %p194
      %p197 = scmp.ne.s32.totalorder %s182, %s196
      %p198 = scmp.eq.s32.totalorder %s25, 0
      %p199 = por %p197, %p198
      %s201 = sadd.s32 %s200, 1
      %p204 = scmp.eq.s32.totalorder %s19, 1
      %p205 = scmp.ne.s32.totalorder %s200, %s202
      %p206 = scmp.eq.s32.totalorder %s19, 0
      %p207 = por %p205, %p206
      %p208 = scmp.ne.s32.totalorder %s200, %s202
      %p209 = scmp.eq.s32.totalorder %s24, 1
      %p210 = por %p208, %p209
      %p211 = scmp.ne.s32.totalorder %s202, %s203
      %p212 = scmp.eq.s32.totalorder %s24, 0
      %p213 = por %p211, %p212
      %p214 = scmp.ne.s32.totalorder %s202, %s203
      %p215 = scmp.eq.s32.totalorder %s25, 1
      %p216 = por %p214, %p215
      %p218 = scmp.ne.s32.totalorder %s203, %s217
      %p219 = scmp.eq.s32.totalorder %s25, 0
      %p220 = por %p218, %p219
      %s221 = ssub.s32 %s19, %s26
      %p222 = scmp.eq.s32.totalorder %s221, 0
      %s224 = sadd.s32 %s223, 1
      %s225 = scalar_select %p222, %s223, %s224
      %p228 = pneg %p222
      %p229 = scmp.eq.s32.totalorder %s19, 1
      %p230 = por %p228, %p229
      %p231 = scmp.ne.s32.totalorder %s223, %s226
      %p232 = scmp.eq.s32.totalorder %s19, 0
      %p233 = por %p231, %p232
      %p234 = scmp.ne.s32.totalorder %s223, %s226
      %p235 = scmp.eq.s32.totalorder %s24, 1
      %p236 = por %p234, %p235
      %p237 = scmp.ne.s32.totalorder %s226, %s227
      %p238 = scmp.eq.s32.totalorder %s24, 0
      %p239 = por %p237, %p238
      %p240 = scmp.ne.s32.totalorder %s226, %s227
      %p241 = scmp.eq.s32.totalorder %s25, 1
      %p242 = por %p240, %p241
      %p244 = scmp.ne.s32.totalorder %s227, %s243
      %p245 = scmp.eq.s32.totalorder %s25, 0
      %p246 = por %p244, %p245
      %s247 = ssub.s32 %s19, %s26
      %p248 = scmp.eq.s32.totalorder %s247, 0
      %s250 = sadd.s32 %s249, 1
      %s251 = scalar_select %p248, %s249, %s250
      %p254 = pneg %p248
      %p255 = scmp.eq.s32.totalorder %s19, 1
      %p256 = por %p254, %p255
      %p257 = scmp.ne.s32.totalorder %s249, %s252
      %p258 = scmp.eq.s32.totalorder %s19, 0
      %p259 = por %p257, %p258
      %p260 = scmp.ne.s32.totalorder %s249, %s252
      %p261 = scmp.eq.s32.totalorder %s24, 1
      %p262 = por %p260, %p261
      %p263 = scmp.ne.s32.totalorder %s252, %s253
      %p264 = scmp.eq.s32.totalorder %s24, 0
      %p265 = por %p263, %p264
      %p266 = scmp.ne.s32.totalorder %s252, %s253
      %p267 = scmp.eq.s32.totalorder %s25, 1
      %p268 = por %p266, %p267
      %p270 = scmp.ne.s32.totalorder %s253, %s269
      %p271 = scmp.eq.s32.totalorder %s25, 0
      %p272 = por %p270, %p271
      %p273 = scmp.le.s32.totalorder 1, %s19
      %p274 = scmp.lt.s32.totalorder %s19, 3
      %p275 = pnand %p273, %p274
      %p276 = pneg %p275
      // Predicated region
      $region9: #{tpu_custom_call.1} parent=5 // pred_check
        _
      $region10: #{tpu_custom_call.1} parent=5 // pred_check_branch
        %278 = sbr.rel (%p275) target = $region12
      $region11: #{tpu_custom_call.1} parent=5 // pred_region
        %s279 = ssub.s32 %s19, 1
        // Predicated region
        $region13: #{tpu_custom_call.1} parent=11 // pred_check
          %p280 = pneg %p66
        $region14: #{tpu_custom_call.1} parent=11 // pred_check_branch
          %282 = sbr.rel (%p280) target = $region16
        $region15: #{tpu_custom_call.1} parent=11 // pred_region
          %s284 = ssub.s32 384, 384
          %285 = vsyncadd [#allocation3], %s284
          %s286 = sshll.u32 [#allocation2], 4
          %s287 = int_to_ptr.vmem [resolvable:$true] %s286
          %292 = dma.hbm_to_vmem [thread:$0]  %s1, 384, %s287, [#allocation3], 128, 128, 8
        $region16: #{tpu_custom_call.1} parent=11 // pred_fallthru
          _
        // Predicated region
        $region17: #{tpu_custom_call.1} parent=11 // pred_check
          %p293 = pneg %p87
        $region18: #{tpu_custom_call.1} parent=11 // pred_check_branch
          %295 = sbr.rel (%p293) target = $region20
        $region19: #{tpu_custom_call.1} parent=11 // pred_region
          _
        $region20: #{tpu_custom_call.1} parent=11 // pred_fallthru
          _
        // Predicated region
        $region21: #{tpu_custom_call.1} parent=11 // pred_check
          %p296 = pneg %p108
        $region22: #{tpu_custom_call.1} parent=11 // pred_check_branch
          %298 = sbr.rel (%p296) target = $region24
        $region23: #{tpu_custom_call.1} parent=11 // pred_region
          %s300 = ssub.s32 4096, 4096
          %301 = vsyncadd [#allocation5], %s300
          %s302 = sshll.u32 [#allocation4], 4
          %s303 = int_to_ptr.vmem [resolvable:$true] %s302
          %308 = dma.hbm_to_vmem [thread:$0]  %s3, 4096, %s303, [#allocation5], 128, 128, 8
        $region24: #{tpu_custom_call.1} parent=11 // pred_fallthru
          _
        // Predicated region
        $region25: #{tpu_custom_call.1} parent=11 // pred_check
          %p309 = pneg %p129
        $region26: #{tpu_custom_call.1} parent=11 // pred_check_branch
          %311 = sbr.rel (%p309) target = $region28
        $region27: #{tpu_custom_call.1} parent=11 // pred_region
          %s313 = ssub.s32 32, 32
          %314 = vsyncadd [#allocation5], %s313
          %s316 = sshll.u32 [#allocation6], 4
          %s317 = int_to_ptr.vmem [resolvable:$true] %s316
          %319 = dma.hbm_to_vmem [thread:$0]  %s4, 32, %s317, [#allocation5]
        $region28: #{tpu_custom_call.1} parent=11 // pred_fallthru
          _
        // Predicated region
        $region29: #{tpu_custom_call.1} parent=11 // pred_check
          %p320 = pneg %p150
        $region30: #{tpu_custom_call.1} parent=11 // pred_check_branch
          %322 = sbr.rel (%p320) target = $region32
        $region31: #{tpu_custom_call.1} parent=11 // pred_region
          _
        $region32: #{tpu_custom_call.1} parent=11 // pred_fallthru
          _
        // Predicated region
        $region33: #{tpu_custom_call.1} parent=11 // pred_check
          %p323 = pneg %p171
        $region34: #{tpu_custom_call.1} parent=11 // pred_check_branch
          %325 = sbr.rel (%p323) target = $region36
        $region35: #{tpu_custom_call.1} parent=11 // pred_region
          %s327 = ssub.s32 32, 32
          %328 = vsyncadd [#allocation8], %s327
          %s330 = sshll.u32 [#allocation7], 4
          %s331 = int_to_ptr.vmem [resolvable:$true] %s330
          %333 = dma.hbm_to_vmem [thread:$0]  %s6, 32, %s331, [#allocation8]
        $region36: #{tpu_custom_call.1} parent=11 // pred_fallthru
          _
        // Predicated region
        $region37: #{tpu_custom_call.1} parent=11 // pred_check
          %p334 = pneg %p192
        $region38: #{tpu_custom_call.1} parent=11 // pred_check_branch
          %336 = sbr.rel (%p334) target = $region40
        $region39: #{tpu_custom_call.1} parent=11 // pred_region
          _
        $region40: #{tpu_custom_call.1} parent=11 // pred_fallthru
          _
        // Predicated region
        $region41: #{tpu_custom_call.1} parent=11 // pred_check
          %p337 = pneg %p213
        $region42: #{tpu_custom_call.1} parent=11 // pred_check_branch
          %339 = sbr.rel (%p337) target = $region44
        $region43: #{tpu_custom_call.1} parent=11 // pred_region
          _
        $region44: #{tpu_custom_call.1} parent=11 // pred_fallthru
          _
      $region12: #{tpu_custom_call.1} parent=5 // pred_fallthru
        _
      %p340 = scmp.lt.s32.totalorder %s19, 2
      // Predicated region
      $region45: #{tpu_custom_call.1} parent=5 // pred_check
        %p341 = pneg %p340
      $region46: #{tpu_custom_call.1} parent=5 // pred_check_branch
        %343 = sbr.rel (%p341) target = $region48
      $region47: #{tpu_custom_call.1} parent=5 // pred_region
        // Predicated region
        $region49: #{tpu_custom_call.1} parent=47 // pred_check
          %p344 = pneg %p39
        $region50: #{tpu_custom_call.1} parent=47 // pred_check_branch
          %346 = sbr.rel (%p344) target = $region52
        $region51: #{tpu_custom_call.1} parent=47 // pred_region
          %s347 = smul.u32 2, %s19
          %p348 = scmp.lt.s32.totalorder %s347, 3
          %s349 = scalar_select %p348, %s347, 3
          %s350 = smul.addr %s349, 8
          %s351 = scalar_lea.vmem %s0, %s350
          %s352 = smul.u32 2, %s19
        $region52: #{tpu_custom_call.1} parent=47 // pred_fallthru
          _
        // Predicated region
        $region53: #{tpu_custom_call.1} parent=47 // pred_check
          %p353 = pneg %p233
        $region54: #{tpu_custom_call.1} parent=47 // pred_check_branch
          %355 = sbr.rel (%p353) target = $region56
        $region55: #{tpu_custom_call.1} parent=47 // pred_region
          %s356 = smul.u32 2, %s19
          %p357 = scmp.lt.s32.totalorder %s356, 3
          %s358 = scalar_select %p357, %s356, 3
          %s359 = smul.addr %s358, 8
          %s360 = scalar_lea.vmem %s9, %s359
          %s361 = smul.u32 2, %s19
        $region56: #{tpu_custom_call.1} parent=47 // pred_fallthru
          _
      $region48: #{tpu_custom_call.1} parent=5 // pred_fallthru
        _
      %p362 = scmp.le.s32.totalorder 1, %s19
      %p363 = scmp.lt.s32.totalorder %s19, 3
      %p364 = pnand %p362, %p363
      %p365 = pneg %p364
      // Predicated region
      $region57: #{tpu_custom_call.1} parent=5 // pred_check
        _
      $region58: #{tpu_custom_call.1} parent=5 // pred_check_branch
        %367 = sbr.rel (%p364) target = $region60
      $region59: #{tpu_custom_call.1} parent=5 // pred_region
        %s368 = ssub.s32 %s19, 1
        // Predicated region
        $region61: #{tpu_custom_call.1} parent=59 // pred_check
          %p369 = pneg %p66
        $region62: #{tpu_custom_call.1} parent=59 // pred_check_branch
          %371 = sbr.rel (%p369) target = $region64
        $region63: #{tpu_custom_call.1} parent=59 // pred_region
          %372 = dma.done [#allocation3], 384
        $region64: #{tpu_custom_call.1} parent=59 // pred_fallthru
          _
        // Predicated region
        $region65: #{tpu_custom_call.1} parent=59 // pred_check
          %p373 = pneg %p108
        $region66: #{tpu_custom_call.1} parent=59 // pred_check_branch
          %375 = sbr.rel (%p373) target = $region68
        $region67: #{tpu_custom_call.1} parent=59 // pred_region
          %376 = dma.done [#allocation5], 4096
        $region68: #{tpu_custom_call.1} parent=59 // pred_fallthru
          _
        // Predicated region
        $region69: #{tpu_custom_call.1} parent=59 // pred_check
          %p377 = pneg %p129
        $region70: #{tpu_custom_call.1} parent=59 // pred_check_branch
          %379 = sbr.rel (%p377) target = $region72
        $region71: #{tpu_custom_call.1} parent=59 // pred_region
          %380 = dma.done [#allocation5], 32
        $region72: #{tpu_custom_call.1} parent=59 // pred_fallthru
          _
        // Predicated region
        $region73: #{tpu_custom_call.1} parent=59 // pred_check
          %p381 = pneg %p171
        $region74: #{tpu_custom_call.1} parent=59 // pred_check_branch
          %383 = sbr.rel (%p381) target = $region76
        $region75: #{tpu_custom_call.1} parent=59 // pred_region
          %384 = dma.done [#allocation8], 32
        $region76: #{tpu_custom_call.1} parent=59 // pred_fallthru
          _
        %s385 = smul.u32 2, %s24
        %p386 = scmp.lt.s32.totalorder %s385, 3
        %s387 = scalar_select %p386, %s385, 3
        %s388 = smul.addr %s387, 8
        %s389 = scalar_lea.vmem %s0, %s388
        %p390 = pneg %p45
        %p391 = pneg %p42
        %p392 = pneg %p66
        %p393 = pneg %p63
        %p394 = pneg %p87
        %p395 = pneg %p84
        %p396 = pneg %p108
        %p397 = pneg %p105
        %p398 = pneg %p129
        %p399 = pneg %p126
        %p400 = pneg %p150
        %p401 = pneg %p147
        %p402 = pneg %p171
        %p403 = pneg %p168
        %p404 = pneg %p192
        %p405 = pneg %p189
        %p406 = pneg %p213
        %p407 = pneg %p210
        %s408 = smul.u32 2, %s24
        %p409 = scmp.lt.s32.totalorder %s408, 3
        %s410 = scalar_select %p409, %s408, 3
        %s411 = smul.addr %s410, 8
        %s412 = scalar_lea.vmem %s9, %s411
        %p413 = pneg %p239
        %p414 = pneg %p236
        %p415 = pneg %p265
        %p416 = pneg %p262
        %s417 = smul.u32 2, %s24
        %p418 = scmp.lt.s32.totalorder %s417, 3
        %s419 = scalar_select %p418, %s417, 3
        %s420 = smul.addr %s419, 8
        %s421 = scalar_lea.vmem %s10, %s420
        %s422 = smul.u32 2, %s24
        %p423 = scmp.lt.s32.totalorder %s422, 3
        %s424 = scalar_select %p423, %s422, 3
        %s425 = smul.addr %s424, 8
        %s426 = scalar_lea.vmem %s0, %s425
        %s427 = smul.u32 2, %s24
        %s428 = smul.u32 2, %s24
        %p429 = scmp.lt.s32.totalorder %s428, 3
        %s430 = scalar_select %p429, %s428, 3
        %s431 = smul.addr %s430, 8
        %s432 = scalar_lea.vmem %s9, %s431
        %s433 = smul.u32 2, %s24
        %s434 = smul.u32 2, %s24
        %p435 = scmp.lt.s32.totalorder %s434, 3
        %s436 = scalar_select %p435, %s434, 3
        %s437 = smul.addr %s436, 8
        %s438 = scalar_lea.vmem %s10, %s437
        %s439 = smul.u32 2, %s24
        %v441 = vld [vmem:[%s426] sm:$0xff]
        %v442 = vld [vmem:[%s426 + $0x8] sm:$0xff]
        %v443 = vpack.c.bf16 %v442, %v441
        %v444 = vld [vmem:[#allocation2] sm:$0xff]
        %v445 = vld [vmem:[#allocation2 + $0x8] sm:$0xff]
        %v446 = vld [vmem:[#allocation2 + $0x10] sm:$0x11]
        %v447 = vld [vmem:[%s2] sm:$0x3]
        %v449 = vlaneseq
        %v450 = vshrl.u32 %v449, 7
        %v451 = vsub.s32 0, %v450
        %v452 = vrot.slane %v447, %v451
        %v453 = vlaneseq
        %v454 = vshrl.u32 %v453, 7
        %v455 = vsub.s32 1, %v454
        %v456 = vrot.slane %v447, %v455
        %v462 = vunpack.c.l.b16 %v444
        %v463 = vunpack.c.h.b16 %v444
        %v464 = vunpack.c.l.b16 %v445
        %v465 = vunpack.c.h.b16 %v445
        %v466 = vunpack.c.l.b16 %v446
        %v467 = vunpack.c.h.b16 %v446
        %v468 = vpack.c.b16 %v464, %v462
        %v469 = vpack.c.b16 %v465, %v463
        %v470 = vpack.c.b16 %v466, %v466
        %v471 = vpack.c.b16 %v467, %v467
        %vm474 = vcmask 138240
        %v476 = vsel %vm474, %v443, 0
        %vm478 = vcmask 1040384
        %v479 = vsel 0, 4294967295, 65535
        %v480 = vsel %vm478, %v479, 0
        %v482 = vand.u32 %v470, %v480
        %v485 = vand.u32 %v471, %v480
        %487 = vmatprep.subr.bf16.mxu0 %v469
        %488 = vmatpush1.bf16.msra.mxu0 %v468
        %489 = vmatprep.subr.bf16.mxu0 %v485
        %490 = vmatpush1.bf16.msra.mxu0 %v482
        %491 = vmatprep.subr.bf16.mxu0 0
        %492 = vmatpush1.bf16.msra.mxu0 0
        %493 = vmatprep.subr.bf16.mxu0 0
        %494 = vmatpush1.bf16.msra.mxu0 0
        %495 = vmatprep.subr.bf16.mxu0 0
        %496 = vmatpush1.bf16.msra.mxu0 0
        %497 = vmatprep.subr.bf16.mxu0 0
        %498 = vmatpush1.bf16.msra.mxu0 0
        %499 = vmatprep.subr.bf16.mxu0 0
        %500 = vmatpush1.bf16.msra.mxu0 0
        %501 = vmatprep.subr.bf16.mxu0 0
        %502 = vmatpush1.bf16.msra.mxu0 0
        %503 = vmatprep.subr.bf16.mxu0 0
        %504 = vmatpush1.bf16.msra.mxu0 0
        %505 = vmatprep.subr.bf16.mxu0 0
        %506 = vmatpush1.bf16.msra.mxu0 0
        %507 = vmatprep.subr.bf16.mxu0 0
        %508 = vmatpush1.bf16.msra.mxu0 0
        %509 = vmatprep.subr.bf16.mxu0 0
        %510 = vmatpush1.bf16.msra.mxu0 0
        %511 = vmatprep.subr.bf16.mxu0 0
        %512 = vmatpush1.bf16.msra.mxu0 0
        %513 = vmatprep.subr.bf16.mxu0 0
        %514 = vmatpush1.bf16.msra.mxu0 0
        %515 = vmatprep.subr.bf16.mxu0 0
        %516 = vmatpush1.bf16.msra.mxu0 0
        %517 = vmatprep.subr.bf16.mxu0 0
        %518 = vmatpush1.bf16.msra.mxu0 0
        %519 = vmatprep.mubr.bf16.mxu0 0
        %520 = vmatmul.mubr.bf16.gmra.mrb[0].mxu0 %v476
        %v521 = vpop.f32.mrb[0].mxu0
        %v522 = vadd.f32 %v452, %v521
        %v523 = vpop.f32.mrb[0].mxu0
        %v524 = vadd.f32 %v456, %v523
        %v525 = vpop.f32.mrb[0].mxu0
        %v526 = vadd.f32 %v452, %v525
        %v527 = vpop.f32.mrb[0].mxu0
        %v528 = vadd.f32 %v456, %v527
        %529 = vdwg.mxu0
        %v530 = vmax.f32 %v522, 0.0
        %v531 = vmax.f32 %v524, 0.0
        %v532 = vmax.f32 %v526, 0.0
        %v533 = vmax.f32 %v528, 0.0
        %v534 = vpack.c.bf16 %v532, %v530
        %v535 = vpack.c.bf16 %v533, %v531
        %v536 = vld [vmem:[#allocation4] sm:$0xff]
        %v537 = vld [vmem:[#allocation4 + $0x8] sm:$0xff]
        %v538 = vld [vmem:[#allocation4 + $0x10] sm:$0xff]
        %v539 = vld [vmem:[#allocation4 + $0x18] sm:$0xff]
        %v540 = vld [vmem:[#allocation4 + $0x20] sm:$0xff]
        %v541 = vld [vmem:[#allocation4 + $0x28] sm:$0xff]
        %v542 = vld [vmem:[#allocation4 + $0x30] sm:$0xff]
        %v543 = vld [vmem:[#allocation4 + $0x38] sm:$0xff]
        %v544 = vld [vmem:[#allocation4 + $0x40] sm:$0xff]
        %v545 = vld [vmem:[#allocation4 + $0x48] sm:$0xff]
        %v546 = vld [vmem:[#allocation4 + $0x50] sm:$0xff]
        %v547 = vld [vmem:[#allocation4 + $0x58] sm:$0xff]
        %v548 = vld [vmem:[#allocation4 + $0x60] sm:$0xff]
        %v549 = vld [vmem:[#allocation4 + $0x68] sm:$0xff]
        %v550 = vld [vmem:[#allocation4 + $0x70] sm:$0xff]
        %v551 = vld [vmem:[#allocation4 + $0x78] sm:$0xff]
        %v552 = vld [vmem:[#allocation4 + $0x80] sm:$0xff]
        %v553 = vld [vmem:[#allocation4 + $0x88] sm:$0xff]
        %v554 = vld [vmem:[#allocation4 + $0x90] sm:$0xff]
        %v555 = vld [vmem:[#allocation4 + $0x98] sm:$0xff]
        %v556 = vld [vmem:[#allocation4 + $0xa0] sm:$0xff]
        %v557 = vld [vmem:[#allocation4 + $0xa8] sm:$0xff]
        %v558 = vld [vmem:[#allocation4 + $0xb0] sm:$0xff]
        %v559 = vld [vmem:[#allocation4 + $0xb8] sm:$0xff]
        %v560 = vld [vmem:[#allocation4 + $0xc0] sm:$0xff]
        %v561 = vld [vmem:[#allocation4 + $0xc8] sm:$0xff]
        %v562 = vld [vmem:[#allocation4 + $0xd0] sm:$0xff]
        %v563 = vld [vmem:[#allocation4 + $0xd8] sm:$0xff]
        %v564 = vld [vmem:[#allocation4 + $0xe0] sm:$0xff]
        %v565 = vld [vmem:[#allocation4 + $0xe8] sm:$0xff]
        %v566 = vld [vmem:[#allocation4 + $0xf0] sm:$0xff]
        %v567 = vld [vmem:[#allocation4 + $0xf8] sm:$0xff]
        %v568 = vld [vmem:[#allocation6] sm:$0x3]
        %v570 = vlaneseq
        %v571 = vshrl.u32 %v570, 7
        %v572 = vsub.s32 0, %v571
        %v573 = vrot.slane %v568, %v572
        %v574 = vlaneseq
        %v575 = vshrl.u32 %v574, 7
        %v576 = vsub.s32 1, %v575
        %v577 = vrot.slane %v568, %v576
        %v612 = vunpack.c.l.b16 %v536
        %v613 = vunpack.c.h.b16 %v536
        %v614 = vunpack.c.l.b16 %v537
        %v615 = vunpack.c.h.b16 %v537
        %v616 = vunpack.c.l.b16 %v538
        %v617 = vunpack.c.h.b16 %v538
        %v618 = vunpack.c.l.b16 %v539
        %v619 = vunpack.c.h.b16 %v539
        %v620 = vunpack.c.l.b16 %v540
        %v621 = vunpack.c.h.b16 %v540
        %v622 = vunpack.c.l.b16 %v541
        %v623 = vunpack.c.h.b16 %v541
        %v624 = vunpack.c.l.b16 %v542
        %v625 = vunpack.c.h.b16 %v542
        %v626 = vunpack.c.l.b16 %v543
        %v627 = vunpack.c.h.b16 %v543
        %v628 = vunpack.c.l.b16 %v544
        %v629 = vunpack.c.h.b16 %v544
        %v630 = vunpack.c.l.b16 %v545
        %v631 = vunpack.c.h.b16 %v545
        %v632 = vunpack.c.l.b16 %v546
        %v633 = vunpack.c.h.b16 %v546
        %v634 = vunpack.c.l.b16 %v547
        %v635 = vunpack.c.h.b16 %v547
        %v636 = vunpack.c.l.b16 %v548
        %v637 = vunpack.c.h.b16 %v548
        %v638 = vunpack.c.l.b16 %v549
        %v639 = vunpack.c.h.b16 %v549
        %v640 = vunpack.c.l.b16 %v550
        %v641 = vunpack.c.h.b16 %v550
        %v642 = vunpack.c.l.b16 %v551
        %v643 = vunpack.c.h.b16 %v551
        %v644 = vunpack.c.l.b16 %v552
        %v645 = vunpack.c.h.b16 %v552
        %v646 = vunpack.c.l.b16 %v553
        %v647 = vunpack.c.h.b16 %v553
        %v648 = vunpack.c.l.b16 %v554
        %v649 = vunpack.c.h.b16 %v554
        %v650 = vunpack.c.l.b16 %v555
        %v651 = vunpack.c.h.b16 %v555
        %v652 = vunpack.c.l.b16 %v556
        %v653 = vunpack.c.h.b16 %v556
        %v654 = vunpack.c.l.b16 %v557
        %v655 = vunpack.c.h.b16 %v557
        %v656 = vunpack.c.l.b16 %v558
        %v657 = vunpack.c.h.b16 %v558
        %v658 = vunpack.c.l.b16 %v559
        %v659 = vunpack.c.h.b16 %v559
        %v660 = vunpack.c.l.b16 %v560
        %v661 = vunpack.c.h.b16 %v560
        %v662 = vunpack.c.l.b16 %v561
        %v663 = vunpack.c.h.b16 %v561
        %v664 = vunpack.c.l.b16 %v562
        %v665 = vunpack.c.h.b16 %v562
        %v666 = vunpack.c.l.b16 %v563
        %v667 = vunpack.c.h.b16 %v563
        %v668 = vunpack.c.l.b16 %v564
        %v669 = vunpack.c.h.b16 %v564
        %v670 = vunpack.c.l.b16 %v565
        %v671 = vunpack.c.h.b16 %v565
        %v672 = vunpack.c.l.b16 %v566
        %v673 = vunpack.c.h.b16 %v566
        %v674 = vunpack.c.l.b16 %v567
        %v675 = vunpack.c.h.b16 %v567
        %v676 = vpack.c.b16 %v614, %v612
        %v677 = vpack.c.b16 %v615, %v613
        %v678 = vpack.c.b16 %v618, %v616
        %v679 = vpack.c.b16 %v619, %v617
        %v680 = vpack.c.b16 %v622, %v620
        %v681 = vpack.c.b16 %v623, %v621
        %v682 = vpack.c.b16 %v626, %v624
        %v683 = vpack.c.b16 %v627, %v625
        %v684 = vpack.c.b16 %v630, %v628
        %v685 = vpack.c.b16 %v631, %v629
        %v686 = vpack.c.b16 %v634, %v632
        %v687 = vpack.c.b16 %v635, %v633
        %v688 = vpack.c.b16 %v638, %v636
        %v689 = vpack.c.b16 %v639, %v637
        %v690 = vpack.c.b16 %v642, %v640
        %v691 = vpack.c.b16 %v643, %v641
        %v692 = vpack.c.b16 %v646, %v644
        %v693 = vpack.c.b16 %v647, %v645
        %v694 = vpack.c.b16 %v650, %v648
        %v695 = vpack.c.b16 %v651, %v649
        %v696 = vpack.c.b16 %v654, %v652
        %v697 = vpack.c.b16 %v655, %v653
        %v698 = vpack.c.b16 %v658, %v656
        %v699 = vpack.c.b16 %v659, %v657
        %v700 = vpack.c.b16 %v662, %v660
        %v701 = vpack.c.b16 %v663, %v661
        %v702 = vpack.c.b16 %v666, %v664
        %v703 = vpack.c.b16 %v667, %v665
        %v704 = vpack.c.b16 %v670, %v668
        %v705 = vpack.c.b16 %v671, %v669
        %v706 = vpack.c.b16 %v674, %v672
        %v707 = vpack.c.b16 %v675, %v673
        %740 = vmatprep.subr.bf16.mxu0 %v677
        %741 = vmatpush1.bf16.msra.mxu0 %v676
        %742 = vmatprep.subr.bf16.mxu0 %v679
        %743 = vmatpush1.bf16.msra.mxu0 %v678
        %744 = vmatprep.subr.bf16.mxu0 %v681
        %745 = vmatpush1.bf16.msra.mxu0 %v680
        %746 = vmatprep.subr.bf16.mxu0 %v683
        %747 = vmatpush1.bf16.msra.mxu0 %v682
        %748 = vmatprep.subr.bf16.mxu0 %v685
        %749 = vmatpush1.bf16.msra.mxu0 %v684
        %750 = vmatprep.subr.bf16.mxu0 %v687
        %751 = vmatpush1.bf16.msra.mxu0 %v686
        %752 = vmatprep.subr.bf16.mxu0 %v689
        %753 = vmatpush1.bf16.msra.mxu0 %v688
        %754 = vmatprep.subr.bf16.mxu0 %v691
        %755 = vmatpush1.bf16.msra.mxu0 %v690
        %756 = vmatprep.subr.bf16.mxu0 %v693
        %757 = vmatpush1.bf16.msra.mxu0 %v692
        %758 = vmatprep.subr.bf16.mxu0 %v695
        %759 = vmatpush1.bf16.msra.mxu0 %v694
        %760 = vmatprep.subr.bf16.mxu0 %v697
        %761 = vmatpush1.bf16.msra.mxu0 %v696
        %762 = vmatprep.subr.bf16.mxu0 %v699
        %763 = vmatpush1.bf16.msra.mxu0 %v698
        %764 = vmatprep.subr.bf16.mxu0 %v701
        %765 = vmatpush1.bf16.msra.mxu0 %v700
        %766 = vmatprep.subr.bf16.mxu0 %v703
        %767 = vmatpush1.bf16.msra.mxu0 %v702
        %768 = vmatprep.subr.bf16.mxu0 %v705
        %769 = vmatpush1.bf16.msra.mxu0 %v704
        %770 = vmatprep.subr.bf16.mxu0 %v707
        %771 = vmatpush1.bf16.msra.mxu0 %v706
        %772 = vmatprep.mubr.bf16.mxu0 %v535
        %773 = vmatmul.mubr.bf16.gmra.mrb[0].mxu0 %v534
        %v774 = vpop.f32.mrb[0].mxu0
        %v775 = vadd.f32 %v573, %v774
        %v776 = vpop.f32.mrb[0].mxu0
        %v777 = vadd.f32 %v577, %v776
        %v778 = vpop.f32.mrb[0].mxu0
        %v779 = vadd.f32 %v573, %v778
        %v780 = vpop.f32.mrb[0].mxu0
        %v781 = vadd.f32 %v577, %v780
        %782 = vdwg.mxu0
        %v783 = vmax.f32 %v775, 0.0
        %v784 = vmax.f32 %v777, 0.0
        %v785 = vmax.f32 %v779, 0.0
        %v786 = vmax.f32 %v781, 0.0
        %v787 = vpack.c.bf16 %v785, %v783
        %v788 = vpack.c.bf16 %v786, %v784
        %v789 = vld [vmem:[%s5] sm:$0xff]
        %v790 = vld [vmem:[%s5 + $0x8] sm:$0xff]
        %v791 = vld [vmem:[%s5 + $0x10] sm:$0xff]
        %v792 = vld [vmem:[%s5 + $0x18] sm:$0xff]
        %v793 = vld [vmem:[%s5 + $0x20] sm:$0xff]
        %v794 = vld [vmem:[%s5 + $0x28] sm:$0xff]
        %v795 = vld [vmem:[%s5 + $0x30] sm:$0xff]
        %v796 = vld [vmem:[%s5 + $0x38] sm:$0xff]
        %v797 = vld [vmem:[%s5 + $0x40] sm:$0xff]
        %v798 = vld [vmem:[%s5 + $0x48] sm:$0xff]
        %v799 = vld [vmem:[%s5 + $0x50] sm:$0xff]
        %v800 = vld [vmem:[%s5 + $0x58] sm:$0xff]
        %v801 = vld [vmem:[%s5 + $0x60] sm:$0xff]
        %v802 = vld [vmem:[%s5 + $0x68] sm:$0xff]
        %v803 = vld [vmem:[%s5 + $0x70] sm:$0xff]
        %v804 = vld [vmem:[%s5 + $0x78] sm:$0xff]
        %v805 = vld [vmem:[%s5 + $0x80] sm:$0xff]
        %v806 = vld [vmem:[%s5 + $0x88] sm:$0xff]
        %v807 = vld [vmem:[%s5 + $0x90] sm:$0xff]
        %v808 = vld [vmem:[%s5 + $0x98] sm:$0xff]
        %v809 = vld [vmem:[%s5 + $0xa0] sm:$0xff]
        %v810 = vld [vmem:[%s5 + $0xa8] sm:$0xff]
        %v811 = vld [vmem:[%s5 + $0xb0] sm:$0xff]
        %v812 = vld [vmem:[%s5 + $0xb8] sm:$0xff]
        %v813 = vld [vmem:[%s5 + $0xc0] sm:$0xff]
        %v814 = vld [vmem:[%s5 + $0xc8] sm:$0xff]
        %v815 = vld [vmem:[%s5 + $0xd0] sm:$0xff]
        %v816 = vld [vmem:[%s5 + $0xd8] sm:$0xff]
        %v817 = vld [vmem:[%s5 + $0xe0] sm:$0xff]
        %v818 = vld [vmem:[%s5 + $0xe8] sm:$0xff]
        %v819 = vld [vmem:[%s5 + $0xf0] sm:$0xff]
        %v820 = vld [vmem:[%s5 + $0xf8] sm:$0xff]
        %v821 = vld [vmem:[#allocation7] sm:$0x3]
        %v823 = vlaneseq
        %v824 = vshrl.u32 %v823, 7
        %v825 = vsub.s32 0, %v824
        %v826 = vrot.slane %v821, %v825
        %v827 = vlaneseq
        %v828 = vshrl.u32 %v827, 7
        %v829 = vsub.s32 1, %v828
        %v830 = vrot.slane %v821, %v829
        %v865 = vunpack.c.l.b16 %v789
        %v866 = vunpack.c.h.b16 %v789
        %v867 = vunpack.c.l.b16 %v790
        %v868 = vunpack.c.h.b16 %v790
        %v869 = vunpack.c.l.b16 %v791
        %v870 = vunpack.c.h.b16 %v791
        %v871 = vunpack.c.l.b16 %v792
        %v872 = vunpack.c.h.b16 %v792
        %v873 = vunpack.c.l.b16 %v793
        %v874 = vunpack.c.h.b16 %v793
        %v875 = vunpack.c.l.b16 %v794
        %v876 = vunpack.c.h.b16 %v794
        %v877 = vunpack.c.l.b16 %v795
        %v878 = vunpack.c.h.b16 %v795
        %v879 = vunpack.c.l.b16 %v796
        %v880 = vunpack.c.h.b16 %v796
        %v881 = vunpack.c.l.b16 %v797
        %v882 = vunpack.c.h.b16 %v797
        %v883 = vunpack.c.l.b16 %v798
        %v884 = vunpack.c.h.b16 %v798
        %v885 = vunpack.c.l.b16 %v799
        %v886 = vunpack.c.h.b16 %v799
        %v887 = vunpack.c.l.b16 %v800
        %v888 = vunpack.c.h.b16 %v800
        %v889 = vunpack.c.l.b16 %v801
        %v890 = vunpack.c.h.b16 %v801
        %v891 = vunpack.c.l.b16 %v802
        %v892 = vunpack.c.h.b16 %v802
        %v893 = vunpack.c.l.b16 %v803
        %v894 = vunpack.c.h.b16 %v803
        %v895 = vunpack.c.l.b16 %v804
        %v896 = vunpack.c.h.b16 %v804
        %v897 = vunpack.c.l.b16 %v805
        %v898 = vunpack.c.h.b16 %v805
        %v899 = vunpack.c.l.b16 %v806
        %v900 = vunpack.c.h.b16 %v806
        %v901 = vunpack.c.l.b16 %v807
        %v902 = vunpack.c.h.b16 %v807
        %v903 = vunpack.c.l.b16 %v808
        %v904 = vunpack.c.h.b16 %v808
        %v905 = vunpack.c.l.b16 %v809
        %v906 = vunpack.c.h.b16 %v809
        %v907 = vunpack.c.l.b16 %v810
        %v908 = vunpack.c.h.b16 %v810
        %v909 = vunpack.c.l.b16 %v811
        %v910 = vunpack.c.h.b16 %v811
        %v911 = vunpack.c.l.b16 %v812
        %v912 = vunpack.c.h.b16 %v812
        %v913 = vunpack.c.l.b16 %v813
        %v914 = vunpack.c.h.b16 %v813
        %v915 = vunpack.c.l.b16 %v814
        %v916 = vunpack.c.h.b16 %v814
        %v917 = vunpack.c.l.b16 %v815
        %v918 = vunpack.c.h.b16 %v815
        %v919 = vunpack.c.l.b16 %v816
        %v920 = vunpack.c.h.b16 %v816
        %v921 = vunpack.c.l.b16 %v817
        %v922 = vunpack.c.h.b16 %v817
        %v923 = vunpack.c.l.b16 %v818
        %v924 = vunpack.c.h.b16 %v818
        %v925 = vunpack.c.l.b16 %v819
        %v926 = vunpack.c.h.b16 %v819
        %v927 = vunpack.c.l.b16 %v820
        %v928 = vunpack.c.h.b16 %v820
        %v929 = vpack.c.b16 %v867, %v865
        %v930 = vpack.c.b16 %v868, %v866
        %v931 = vpack.c.b16 %v871, %v869
        %v932 = vpack.c.b16 %v872, %v870
        %v933 = vpack.c.b16 %v875, %v873
        %v934 = vpack.c.b16 %v876, %v874
        %v935 = vpack.c.b16 %v879, %v877
        %v936 = vpack.c.b16 %v880, %v878
        %v937 = vpack.c.b16 %v883, %v881
        %v938 = vpack.c.b16 %v884, %v882
        %v939 = vpack.c.b16 %v887, %v885
        %v940 = vpack.c.b16 %v888, %v886
        %v941 = vpack.c.b16 %v891, %v889
        %v942 = vpack.c.b16 %v892, %v890
        %v943 = vpack.c.b16 %v895, %v893
        %v944 = vpack.c.b16 %v896, %v894
        %v945 = vpack.c.b16 %v899, %v897
        %v946 = vpack.c.b16 %v900, %v898
        %v947 = vpack.c.b16 %v903, %v901
        %v948 = vpack.c.b16 %v904, %v902
        %v949 = vpack.c.b16 %v907, %v905
        %v950 = vpack.c.b16 %v908, %v906
        %v951 = vpack.c.b16 %v911, %v909
        %v952 = vpack.c.b16 %v912, %v910
        %v953 = vpack.c.b16 %v915, %v913
        %v954 = vpack.c.b16 %v916, %v914
        %v955 = vpack.c.b16 %v919, %v917
        %v956 = vpack.c.b16 %v920, %v918
        %v957 = vpack.c.b16 %v923, %v921
        %v958 = vpack.c.b16 %v924, %v922
        %v959 = vpack.c.b16 %v927, %v925
        %v960 = vpack.c.b16 %v928, %v926
        %993 = vmatprep.subr.bf16.mxu0 %v930
        %994 = vmatpush1.bf16.msra.mxu0 %v929
        %995 = vmatprep.subr.bf16.mxu0 %v932
        %996 = vmatpush1.bf16.msra.mxu0 %v931
        %997 = vmatprep.subr.bf16.mxu0 %v934
        %998 = vmatpush1.bf16.msra.mxu0 %v933
        %999 = vmatprep.subr.bf16.mxu0 %v936
        %1000 = vmatpush1.bf16.msra.mxu0 %v935
        %1001 = vmatprep.subr.bf16.mxu0 %v938
        %1002 = vmatpush1.bf16.msra.mxu0 %v937
        %1003 = vmatprep.subr.bf16.mxu0 %v940
        %1004 = vmatpush1.bf16.msra.mxu0 %v939
        %1005 = vmatprep.subr.bf16.mxu0 %v942
        %1006 = vmatpush1.bf16.msra.mxu0 %v941
        %1007 = vmatprep.subr.bf16.mxu0 %v944
        %1008 = vmatpush1.bf16.msra.mxu0 %v943
        %1009 = vmatprep.subr.bf16.mxu0 %v946
        %1010 = vmatpush1.bf16.msra.mxu0 %v945
        %1011 = vmatprep.subr.bf16.mxu0 %v948
        %1012 = vmatpush1.bf16.msra.mxu0 %v947
        %1013 = vmatprep.subr.bf16.mxu0 %v950
        %1014 = vmatpush1.bf16.msra.mxu0 %v949
        %1015 = vmatprep.subr.bf16.mxu0 %v952
        %1016 = vmatpush1.bf16.msra.mxu0 %v951
        %1017 = vmatprep.subr.bf16.mxu0 %v954
        %1018 = vmatpush1.bf16.msra.mxu0 %v953
        %1019 = vmatprep.subr.bf16.mxu0 %v956
        %1020 = vmatpush1.bf16.msra.mxu0 %v955
        %1021 = vmatprep.subr.bf16.mxu0 %v958
        %1022 = vmatpush1.bf16.msra.mxu0 %v957
        %1023 = vmatprep.subr.bf16.mxu0 %v960
        %1024 = vmatpush1.bf16.msra.mxu0 %v959
        %1025 = vmatprep.mubr.bf16.mxu0 %v788
        %1026 = vmatmul.mubr.bf16.gmra.mrb[0].mxu0 %v787
        %v1027 = vpop.f32.mrb[0].mxu0
        %v1028 = vadd.f32 %v826, %v1027
        %v1029 = vpop.f32.mrb[0].mxu0
        %v1030 = vadd.f32 %v830, %v1029
        %v1031 = vpop.f32.mrb[0].mxu0
        %v1032 = vadd.f32 %v826, %v1031
        %v1033 = vpop.f32.mrb[0].mxu0
        %v1034 = vadd.f32 %v830, %v1033
        %1035 = vdwg.mxu0
        %v1036 = vmax.f32 %v1028, 0.0
        %v1037 = vmax.f32 %v1030, 0.0
        %v1038 = vmax.f32 %v1032, 0.0
        %v1039 = vmax.f32 %v1034, 0.0
        %v1040 = vpack.c.bf16 %v1038, %v1036
        %v1041 = vpack.c.bf16 %v1039, %v1037
        %v1042 = vld [vmem:[%s7] sm:$0xf]
        %v1043 = vld [vmem:[%s7 + $0x4] sm:$0xf]
        %v1044 = vld [vmem:[%s7 + $0x8] sm:$0xf]
        %v1045 = vld [vmem:[%s7 + $0xc] sm:$0xf]
        %v1046 = vld [vmem:[%s7 + $0x10] sm:$0xf]
        %v1047 = vld [vmem:[%s7 + $0x14] sm:$0xf]
        %v1048 = vld [vmem:[%s7 + $0x18] sm:$0xf]
        %v1049 = vld [vmem:[%s7 + $0x1c] sm:$0xf]
        %v1050 = vld [vmem:[%s7 + $0x20] sm:$0xf]
        %v1051 = vld [vmem:[%s7 + $0x24] sm:$0xf]
        %v1052 = vld [vmem:[%s7 + $0x28] sm:$0xf]
        %v1053 = vld [vmem:[%s7 + $0x2c] sm:$0xf]
        %v1054 = vld [vmem:[%s7 + $0x30] sm:$0xf]
        %v1055 = vld [vmem:[%s7 + $0x34] sm:$0xf]
        %v1056 = vld [vmem:[%s7 + $0x38] sm:$0xf]
        %v1057 = vld [vmem:[%s7 + $0x3c] sm:$0xf]
        %v1058 = vld [vmem:[%s7 + $0x40] sm:$0xf]
        %v1059 = vld [vmem:[%s7 + $0x44] sm:$0xf]
        %v1060 = vld [vmem:[%s7 + $0x48] sm:$0xf]
        %v1061 = vld [vmem:[%s7 + $0x4c] sm:$0xf]
        %v1062 = vld [vmem:[%s7 + $0x50] sm:$0xf]
        %v1063 = vld [vmem:[%s7 + $0x54] sm:$0xf]
        %v1064 = vld [vmem:[%s7 + $0x58] sm:$0xf]
        %v1065 = vld [vmem:[%s7 + $0x5c] sm:$0xf]
        %v1066 = vld [vmem:[%s7 + $0x60] sm:$0xf]
        %v1067 = vld [vmem:[%s7 + $0x64] sm:$0xf]
        %v1068 = vld [vmem:[%s7 + $0x68] sm:$0xf]
        %v1069 = vld [vmem:[%s7 + $0x6c] sm:$0xf]
        %v1070 = vld [vmem:[%s7 + $0x70] sm:$0xf]
        %v1071 = vld [vmem:[%s7 + $0x74] sm:$0xf]
        %v1072 = vld [vmem:[%s7 + $0x78] sm:$0xf]
        %v1073 = vld [vmem:[%s7 + $0x7c] sm:$0xf]
        %v1074 = vld [vmem:[%s8] sm:$0x1]
        %v1076 = vlaneseq
        %v1077 = vshrl.u32 %v1076, 7
        %v1078 = vsub.s32 0, %v1077
        %v1079 = vrot.slane %v1074, %v1078
        %v1113 = vunpack.c.l.b16 %v1042
        %v1114 = vunpack.c.l.b16 %v1043
        %v1115 = vunpack.c.l.b16 %v1044
        %v1116 = vunpack.c.l.b16 %v1045
        %v1117 = vunpack.c.l.b16 %v1046
        %v1118 = vunpack.c.l.b16 %v1047
        %v1119 = vunpack.c.l.b16 %v1048
        %v1120 = vunpack.c.l.b16 %v1049
        %v1121 = vunpack.c.l.b16 %v1050
        %v1122 = vunpack.c.l.b16 %v1051
        %v1123 = vunpack.c.l.b16 %v1052
        %v1124 = vunpack.c.l.b16 %v1053
        %v1125 = vunpack.c.l.b16 %v1054
        %v1126 = vunpack.c.l.b16 %v1055
        %v1127 = vunpack.c.l.b16 %v1056
        %v1128 = vunpack.c.l.b16 %v1057
        %v1129 = vunpack.c.l.b16 %v1058
        %v1130 = vunpack.c.l.b16 %v1059
        %v1131 = vunpack.c.l.b16 %v1060
        %v1132 = vunpack.c.l.b16 %v1061
        %v1133 = vunpack.c.l.b16 %v1062
        %v1134 = vunpack.c.l.b16 %v1063
        %v1135 = vunpack.c.l.b16 %v1064
        %v1136 = vunpack.c.l.b16 %v1065
        %v1137 = vunpack.c.l.b16 %v1066
        %v1138 = vunpack.c.l.b16 %v1067
        %v1139 = vunpack.c.l.b16 %v1068
        %v1140 = vunpack.c.l.b16 %v1069
        %v1141 = vunpack.c.l.b16 %v1070
        %v1142 = vunpack.c.l.b16 %v1071
        %v1143 = vunpack.c.l.b16 %v1072
        %v1144 = vunpack.c.l.b16 %v1073
        %v1145 = vpack.c.b16 %v1114, %v1113
        %v1146 = vpack.c.b16 %v1116, %v1115
        %v1147 = vpack.c.b16 %v1118, %v1117
        %v1148 = vpack.c.b16 %v1120, %v1119
        %v1149 = vpack.c.b16 %v1122, %v1121
        %v1150 = vpack.c.b16 %v1124, %v1123
        %v1151 = vpack.c.b16 %v1126, %v1125
        %v1152 = vpack.c.b16 %v1128, %v1127
        %v1153 = vpack.c.b16 %v1130, %v1129
        %v1154 = vpack.c.b16 %v1132, %v1131
        %v1155 = vpack.c.b16 %v1134, %v1133
        %v1156 = vpack.c.b16 %v1136, %v1135
        %v1157 = vpack.c.b16 %v1138, %v1137
        %v1158 = vpack.c.b16 %v1140, %v1139
        %v1159 = vpack.c.b16 %v1142, %v1141
        %v1160 = vpack.c.b16 %v1144, %v1143
        %1177 = vmatprep.subr.bf16.mxu0 0
        %1178 = vmatpush1.bf16.msra.mxu0 %v1145
        %1179 = vmatprep.subr.bf16.mxu0 0
        %1180 = vmatpush1.bf16.msra.mxu0 %v1146
        %1181 = vmatprep.subr.bf16.mxu0 0
        %1182 = vmatpush1.bf16.msra.mxu0 %v1147
        %1183 = vmatprep.subr.bf16.mxu0 0
        %1184 = vmatpush1.bf16.msra.mxu0 %v1148
        %1185 = vmatprep.subr.bf16.mxu0 0
        %1186 = vmatpush1.bf16.msra.mxu0 %v1149
        %1187 = vmatprep.subr.bf16.mxu0 0
        %1188 = vmatpush1.bf16.msra.mxu0 %v1150
        %1189 = vmatprep.subr.bf16.mxu0 0
        %1190 = vmatpush1.bf16.msra.mxu0 %v1151
        %1191 = vmatprep.subr.bf16.mxu0 0
        %1192 = vmatpush1.bf16.msra.mxu0 %v1152
        %1193 = vmatprep.subr.bf16.mxu0 0
        %1194 = vmatpush1.bf16.msra.mxu0 %v1153
        %1195 = vmatprep.subr.bf16.mxu0 0
        %1196 = vmatpush1.bf16.msra.mxu0 %v1154
        %1197 = vmatprep.subr.bf16.mxu0 0
        %1198 = vmatpush1.bf16.msra.mxu0 %v1155
        %1199 = vmatprep.subr.bf16.mxu0 0
        %1200 = vmatpush1.bf16.msra.mxu0 %v1156
        %1201 = vmatprep.subr.bf16.mxu0 0
        %1202 = vmatpush1.bf16.msra.mxu0 %v1157
        %1203 = vmatprep.subr.bf16.mxu0 0
        %1204 = vmatpush1.bf16.msra.mxu0 %v1158
        %1205 = vmatprep.subr.bf16.mxu0 0
        %1206 = vmatpush1.bf16.msra.mxu0 %v1159
        %1207 = vmatprep.subr.bf16.mxu0 0
        %1208 = vmatpush1.bf16.msra.mxu0 %v1160
        %1209 = vmatprep.mubr.bf16.mxu0 %v1041
        %1210 = vmatmul.mubr.bf16.gmra.mrb[0].mxu0 %v1040
        %v1211 = vpop.f32.mrb[0].mxu0
        %v1212 = vadd.f32 %v1079, %v1211
        %v1213 = vpop.f32.mrb[0].mxu0
        %v1214 = vpop.f32.mrb[0].mxu0
        %v1215 = vadd.f32 %v1079, %v1214
        %v1216 = vpop.f32.mrb[0].mxu0
        %1217 = vdwg.mxu0
        %v1218 = vmax.f32 %v1212, -20.0
        %v1219 = vmax.f32 %v1215, -20.0
        %v1220 = vmin.f32 %v1218, 2.0
        %v1221 = vmin.f32 %v1219, 2.0
        %v1222 = vld [vmem:[%s432] sm:$0xff]
        %v1223 = vld [vmem:[%s432 + $0x8] sm:$0xff]
        %v1224 = vmul.f32 %v1220, 1.442695
        %v1225 = vpow.pop %v1224
        %v1226 = vmul.f32 %v1221, 1.442695
        %v1227 = vpow.pop %v1226
        %1230 = vrot.lane.b32.xlu0 %v1222, 6
        %v1231 = vpop.permute.xlu0 %1230
        %1232 = vrot.lane.b32.xlu0 %v1223, 6
        %v1233 = vpop.permute.xlu0 %1232
        %v1236 = vmul.f32 %v1225, %v1231
        %v1237 = vmul.f32 %v1227, %v1233
        %1240 = vrot.lane.b32.xlu0 %v1236, 122
        %v1241 = vpop.permute.xlu0 %1240
        %1242 = vrot.lane.b32.xlu0 %v1237, 122
        %v1243 = vpop.permute.xlu0 %1242
        %v1246 = vadd.f32 %v1212, %v1241
        %v1247 = vadd.f32 %v1215, %v1243
        %v1248 = vmul.f32 %v1222, %v1222
        %v1249 = vmul.f32 %v1223, %v1223
        %v1250 = vmul.f32 %v1248, -0.5
        %v1251 = vmul.f32 %v1249, -0.5
        %1254 = vrot.lane.b32.xlu0 %v1220, 122
        %v1255 = vpop.permute.xlu0 %1254
        %1256 = vrot.lane.b32.xlu0 %v1221, 122
        %v1257 = vpop.permute.xlu0 %1256
        %v1260 = vsub.f32 %v1250, %v1255
        %v1261 = vsub.f32 %v1251, %v1257
        %v1262 = vsub.f32 %v1260, 0.9189385
        %v1263 = vsub.f32 %v1261, 0.9189385
        %v1264 = vtanh.pop %v1246
        %v1265 = vtanh.pop %v1247
        %v1266 = vsub.f32 0.6931472, %v1246
        %v1267 = vsub.f32 0.6931472, %v1247
        %v1268 = vmul.f32 %v1246, -2.0
        %v1269 = vmul.f32 %v1247, -2.0
        %v1270 = vmax.f32 %v1268, 0.0
        %v1271 = vmax.f32 %v1269, 0.0
        %vm1272 = vcmp.ne.f32.partialorder %v1268, %v1268
        %vm1273 = vcmp.ne.f32.partialorder %v1269, %v1269
        %v1274 = vadd.f32 %v1268, 0.0
        %v1275 = vadd.f32 %v1269, 0.0
        %v1276 = vand.u32 2147483647, %v1268
        %v1277 = vand.u32 2147483647, %v1269
        %v1278 = vsub.f32 0.0, %v1276
        %v1279 = vsub.f32 0.0, %v1277
        %v1280 = vmul.f32 %v1278, 1.442695
        %v1281 = vpow.pop %v1280
        %v1282 = vmul.f32 %v1279, 1.442695
        %v1283 = vpow.pop %v1282
        %v1284 = vadd.f32 %v1281, 1.0
        %v1285 = vlog2.pop %v1284
        %v1286 = vmul.f32 %v1285, 0.6931472
        %v1287 = vmul.f32 -0.5, %v1281
        %v1288 = vadd.f32 %v1287, 1.0
        %v1289 = vmul.f32 %v1288, %v1281
        %v1290 = vand.u32 2147483647, %v1281
        %vm1291 = vcmp.lt.f32.partialorder %v1290, 0.0004427343
        %v1292 = vsel %vm1291, %v1289, %v1286
        %v1293 = vadd.f32 %v1283, 1.0
        %v1294 = vlog2.pop %v1293
        %v1295 = vmul.f32 %v1294, 0.6931472
        %v1296 = vmul.f32 -0.5, %v1283
        %v1297 = vadd.f32 %v1296, 1.0
        %v1298 = vmul.f32 %v1297, %v1283
        %v1299 = vand.u32 2147483647, %v1283
        %vm1300 = vcmp.lt.f32.partialorder %v1299, 0.0004427343
        %v1301 = vsel %vm1300, %v1298, %v1295
        %v1302 = vadd.f32 %v1270, %v1292
        %v1303 = vadd.f32 %v1271, %v1301
        %v1304 = vsel %vm1272, %v1274, %v1302
        %v1305 = vsel %vm1273, %v1275, %v1303
        %v1306 = vsub.f32 %v1266, %v1304
        %v1307 = vsub.f32 %v1267, %v1305
        %v1308 = vmul.f32 %v1306, 2.0
        %v1309 = vmul.f32 %v1307, 2.0
        %v1310 = vsub.f32 %v1262, %v1308
        %v1311 = vsub.f32 %v1263, %v1309
        %vm1312 = vcmask 48128
        %v1313 = vsel %vm1312, %v1310, 0.0
        %1314 = vadd.xlane.f32.xlu0 %v1313
        %v1315 = vpop.xlane.xlu0 %1314
        %v1316 = vsel %vm1312, %v1311, 0.0
        %1317 = vadd.xlane.f32.xlu0 %v1316
        %v1318 = vpop.xlane.xlu0 %1317
        %v1319 = vmul.f32 %v1264, 2.0
        %v1320 = vmul.f32 %v1265, 2.0
        %v1321 = vsel %vm1312, %v1319, %v1315
        %v1322 = vsel %vm1312, %v1320, %v1318
        %vm1323 = vcmask 56320
        %1324 = vst.msk [vmem:[%s438] sm:$0xff] %vm1323, %v1321
        %1325 = vst.msk [vmem:[%s438 + $0x8] sm:$0xff] %vm1323, %v1322
        %s1326 = smul.u32 2, %s24
        %p1327 = scmp.lt.s32.totalorder %s1326, 3
        %s1328 = scalar_select %p1327, %s1326, 3
        %s1329 = smul.addr %s1328, 8
        %s1330 = scalar_lea.vmem %s10, %s1329
        // Predicated region
        $region77: #{tpu_custom_call.1} parent=59 // pred_check
          %p1331 = pneg %p262
        $region78: #{tpu_custom_call.1} parent=59 // pred_check_branch
          %1333 = sbr.rel (%p1331) target = $region80
        $region79: #{tpu_custom_call.1} parent=59 // pred_region
          %s1334 = smul.u32 2, %s24
        $region80: #{tpu_custom_call.1} parent=59 // pred_fallthru
          _
      $region60: #{tpu_custom_call.1} parent=5 // pred_fallthru
        _
      %p1335 = scmp.le.s32.totalorder 2, %s19
      // Predicated region
      $region81: #{tpu_custom_call.1} parent=5 // pred_check
        %p1336 = pneg %p1335
      $region82: #{tpu_custom_call.1} parent=5 // pred_check_branch
        %1338 = sbr.rel (%p1336) target = $region84
      $region83: #{tpu_custom_call.1} parent=5 // pred_region
        %s1339 = ssub.s32 %s19, 2
        // Predicated region
        $region85: #{tpu_custom_call.1} parent=83 // pred_check
          %p1340 = pneg %p268
        $region86: #{tpu_custom_call.1} parent=83 // pred_check_branch
          %1342 = sbr.rel (%p1340) target = $region88
        $region87: #{tpu_custom_call.1} parent=83 // pred_region
          %s1343 = smul.u32 2, %s25
          %p1344 = scmp.lt.s32.totalorder %s1343, 3
          %s1345 = scalar_select %p1344, %s1343, 3
          %s1346 = smul.addr %s1345, 8
          %s1347 = scalar_lea.vmem %s10, %s1346
        $region88: #{tpu_custom_call.1} parent=83 // pred_fallthru
          _
      $region84: #{tpu_custom_call.1} parent=5 // pred_fallthru
        _
    $region6: #{tpu_custom_call.1} parent=1 // loop_footer
      %s23 = sadd.s32 1, %s19
    $region7: #{tpu_custom_call.1} parent=1 // loop_footer_branch
      %18 = sbr.rel target = $region3
    $region8: #{tpu_custom_call.1} parent=1 // loop_exit
      _
    %1348 = vsyncpa [#allocation3], 1
    %s1349 = scalar_lea.sflag [#allocation3], 1
    %1350 = vsyncpa %s1349, 1
    %1351 = vsyncpa [#allocation5], 1
    %1352 = vsyncpa [#allocation8], 1

</llo_original>
